<compile_context>
chip_gen: v5e
topology: v5e:2x2
jax: 0.10.0
libtpu: 0.0.40
codegen_flags: <defaults>
</compile_context>

<pallas_src>
import functools

import jax
import jax.numpy as jnp
from jax.experimental import pallas as pl
from jax.experimental.pallas import tpu as pltpu


def _tstp_kernel(x_ref, mean_ref, std_ref, sum_acc, sq_acc, *, t_total, mask_t):
    # x_ref:    (b_tile, cf_tile, t_tile) input chunk (native dtype)
    # mean_ref: (b_tile, cf_tile) output
    # std_ref:  (b_tile, cf_tile) output
    # sum_acc, sq_acc: (b_tile, cf_tile) f32 accumulators (persist across T axis)
    k = pl.program_id(2)

    @pl.when(k == 0)
    def _init():
        sum_acc[...] = jnp.zeros_like(sum_acc)
        sq_acc[...] = jnp.zeros_like(sq_acc)

    # Chunk-wise cast to f32 (keeps VMEM block in native dtype; f32 accumulation).
    x = x_ref[...].astype(jnp.float32)

    if mask_t:
        # Final T-chunk may read past the true T extent; zero out padded columns.
        t_tile = x.shape[-1]
        col = k * t_tile + jax.lax.broadcasted_iota(jnp.int32, x.shape, 2)
        x = jnp.where(col < t_total, x, 0.0)

    sum_acc[...] += jnp.sum(x, axis=-1)
    sq_acc[...] += jnp.sum(x * x, axis=-1)

    @pl.when(k == pl.num_programs(2) - 1)
    def _finalize():
        s = sum_acc[...]
        mean = s * jnp.float32(1.0 / t_total)
        # Unbiased variance (torch.var default): (sum(x^2) - sum(x)*mean) / (T-1).
        # Note: torch yields NaN at T==1; we guard the divide and return std=sqrt(1e-8).
        denom = (t_total - 1) if t_total > 1 else 1
        var = (sq_acc[...] - s * mean) * jnp.float32(1.0 / denom)
        std = jnp.sqrt(jnp.maximum(var, 0.0) + jnp.float32(1e-8))
        mean_ref[...] = mean.astype(mean_ref.dtype)
        std_ref[...] = std.astype(std_ref.dtype)


def _pick_t_tile(t):
    # Full-extent for modest T (no mask, no 128-alignment requirement);
    # otherwise a lane-aligned 512-wide chunk along the reduction axis.
    return t if t <= 512 else 512


def _pick_b_tile(b):
    # Output block's second-to-last dim must be a multiple of 8 or the full B.
    return 8 if (b > 8 and b % 8 == 0) else b


def _pick_cf_tile(cf, max_cf):
    # Output last dim (lanes) must be a multiple of 128 or full CF; also require it
    # to divide CF so no ragged CF blocks. Prefer the largest tile within budget.
    best = None
    for m in range(128, cf, 128):
        if cf % m == 0 and m <= max_cf:
            best = m
    return best if best is not None else cf


def temporal_stats_pool(x, *, vmem_budget_bytes=4 * 1024 * 1024):
    """x: (B, C, F, T) -> (B, 2*C*F) = concat(mean_over_T, std_over_T)."""
    b, c, f, t = x.shape
    cf = c * f
    x2 = x.reshape(b, cf, t)  # free row-major reshape (same ordering as torch.flatten(1))

    itemsize = jnp.dtype(x.dtype).itemsize
    t_tile = _pick_t_tile(t)
    b_tile = _pick_b_tile(b)
    max_cf = max(128, vmem_budget_bytes // max(1, b_tile * t_tile * itemsize))
    cf_tile = _pick_cf_tile(cf, max_cf)

    n_b = b // b_tile
    n_cf = cf // cf_tile
    n_t = pl.cdiv(t, t_tile)
    mask_t = (t % t_tile) != 0

    kernel = functools.partial(_tstp_kernel, t_total=t, mask_t=mask_t)

    grid_spec = pltpu.PrefetchScalarGridSpec(
        num_scalar_prefetch=0,
        grid=(n_b, n_cf, n_t),
        in_specs=[
            pl.BlockSpec((b_tile, cf_tile, t_tile), lambda i, j, k: (i, j, k)),
        ],
        out_specs=[
            pl.BlockSpec((b_tile, cf_tile), lambda i, j, k: (i, j)),
            pl.BlockSpec((b_tile, cf_tile), lambda i, j, k: (i, j)),
        ],
        scratch_shapes=[
            pltpu.VMEM((b_tile, cf_tile), jnp.float32),  # running sum
            pltpu.VMEM((b_tile, cf_tile), jnp.float32),  # running sum of squares
        ],
    )

    # Scoped-VMEM budget: 2x double-buffered input blocks + outputs + accumulators,
    # clamped to a value safe on all generations (v7x physical VMEM is 64 MiB).
    in_blk = b_tile * cf_tile * t_tile * itemsize
    out_blk = b_tile * cf_tile * itemsize
    est = 2 * in_blk + 4 * out_blk + 2 * b_tile * cf_tile * 4 + (1 << 20)
    vmem_limit = int(min(max(est, 16 * 1024 * 1024), 48 * 1024 * 1024))

    mean, std = pl.pallas_call(
        kernel,
        out_shape=(
            jax.ShapeDtypeStruct((b, cf), x.dtype),
            jax.ShapeDtypeStruct((b, cf), x.dtype),
        ),
        grid_spec=grid_spec,
        compiler_params=pltpu.CompilerParams(
            dimension_semantics=("parallel", "parallel", "arbitrary"),
            vmem_limit_bytes=vmem_limit,
        ),
    )(x2)

    # Concat in the wrapper (cheap XLA op on small (B, CF) arrays).
    return jnp.concatenate([mean, std], axis=1)


def _reference(x):
    # Pure-JAX reference mirroring the PyTorch module.
    mean = jnp.mean(x, axis=-1)
    var = jnp.var(x, axis=-1, ddof=1)  # unbiased, like torch.var default
    std = jnp.sqrt(var + 1e-8)
    b = x.shape[0]
    return jnp.concatenate([mean.reshape(b, -1), std.reshape(b, -1)], axis=1)


if __name__ == "__main__":
    # Small shapes consistent with an NCHW conv feature map: B=2, C=4, F=16, T=16.
    key = jax.random.PRNGKey(0)
    x = jax.random.normal(key, (2, 4, 16, 16), dtype=jnp.float32)

    out = temporal_stats_pool(x)
    out = jax.block_until_ready(out)

    ref = _reference(x)
    assert out.shape == (2, 2 * 4 * 16), out.shape
    assert jnp.allclose(out, ref, atol=2e-5, rtol=2e-5), "mismatch vs reference"

    print("KERNEL_OK")
</pallas_src>

<mosaic_0001>
module attributes {stable_mosaic.version = 11 : i64} {
  func.func @_tstp_kernel(%arg0: i32, %arg1: i32, %arg2: i32, %arg3: memref<2x64x16xf32, #tpu.memory_space<vmem>>, %arg4: memref<2x64xf32, #tpu.memory_space<vmem>>, %arg5: memref<2x64xf32, #tpu.memory_space<vmem>>, %arg6: memref<2x64xf32, #tpu.memory_space<vmem>>, %arg7: memref<2x64xf32, #tpu.memory_space<vmem>>) attributes {dimension_semantics = [#tpu.dimension_semantics<parallel>, #tpu.dimension_semantics<parallel>, #tpu.dimension_semantics<arbitrary>], iteration_bounds = array<i64: 1, 1, 1>, scalar_prefetch = 0 : i64, scratch_operands = 2 : i64, tpu.core_type = #tpu.core_type<tc>, window_params = [{transform_indices = @transform_0, window_bounds = array<i64: 2, 64, 16>}, {transform_indices = @transform_1, window_bounds = array<i64: 2, 64>}, {transform_indices = @transform_2, window_bounds = array<i64: 2, 64>}]} {
    %c0_i32 = arith.constant 0 : i32
    %0 = arith.cmpi eq, %arg2, %c0_i32 : i32
    %1 = arith.extui %0 : i1 to i32
    %c0_i32_0 = arith.constant 0 : i32
    %2 = arith.cmpi ne, %1, %c0_i32_0 : i32
    scf.if %2 {
      %cst_14 = arith.constant 0.000000e+00 : f32
      %16 = vector.broadcast %cst_14 : f32 to vector<2x64xf32>
      %c0_15 = arith.constant 0 : index
      %c0_16 = arith.constant 0 : index
      %17 = vector.load %arg6[%c0_15, %c0_16] : memref<2x64xf32, #tpu.memory_space<vmem>>, vector<2x64xf32>
      tpu.vector_store %arg6[%c0_15, %c0_16], %16 {strides = array<i32>} : memref<2x64xf32, #tpu.memory_space<vmem>>, vector<2x64xf32>,
      %cst_17 = arith.constant 0.000000e+00 : f32
      %18 = vector.broadcast %cst_17 : f32 to vector<2x64xf32>
      %c0_18 = arith.constant 0 : index
      %c0_19 = arith.constant 0 : index
      %19 = vector.load %arg7[%c0_18, %c0_19] : memref<2x64xf32, #tpu.memory_space<vmem>>, vector<2x64xf32>
      tpu.vector_store %arg7[%c0_18, %c0_19], %18 {strides = array<i32>} : memref<2x64xf32, #tpu.memory_space<vmem>>, vector<2x64xf32>,
    } else {
    }
    %c0 = arith.constant 0 : index
    %c0_1 = arith.constant 0 : index
    %c0_2 = arith.constant 0 : index
    %3 = vector.load %arg3[%c0, %c0_1, %c0_2] : memref<2x64x16xf32, #tpu.memory_space<vmem>>, vector<2x64x16xf32>
    %c0_3 = arith.constant 0 : index
    %c0_4 = arith.constant 0 : index
    %4 = vector.load %arg6[%c0_3, %c0_4] : memref<2x64xf32, #tpu.memory_space<vmem>>, vector<2x64xf32>
    %cst = arith.constant dense<0.000000e+00> : vector<2x64xf32>
    %5 = vector.multi_reduction <add>, %3, %cst [2] : vector<2x64x16xf32> to vector<2x64xf32>
    %6 = arith.addf %4, %5 : vector<2x64xf32>
    %c0_5 = arith.constant 0 : index
    %c0_6 = arith.constant 0 : index
    %7 = vector.load %arg6[%c0_5, %c0_6] : memref<2x64xf32, #tpu.memory_space<vmem>>, vector<2x64xf32>
    tpu.vector_store %arg6[%c0_5, %c0_6], %6 {strides = array<i32>} : memref<2x64xf32, #tpu.memory_space<vmem>>, vector<2x64xf32>,
    %c0_7 = arith.constant 0 : index
    %c0_8 = arith.constant 0 : index
    %8 = vector.load %arg7[%c0_7, %c0_8] : memref<2x64xf32, #tpu.memory_space<vmem>>, vector<2x64xf32>
    %9 = arith.mulf %3, %3 : vector<2x64x16xf32>
    %cst_9 = arith.constant dense<0.000000e+00> : vector<2x64xf32>
    %10 = vector.multi_reduction <add>, %9, %cst_9 [2] : vector<2x64x16xf32> to vector<2x64xf32>
    %11 = arith.addf %8, %10 : vector<2x64xf32>
    %c0_10 = arith.constant 0 : index
    %c0_11 = arith.constant 0 : index
    %12 = vector.load %arg7[%c0_10, %c0_11] : memref<2x64xf32, #tpu.memory_space<vmem>>, vector<2x64xf32>
    tpu.vector_store %arg7[%c0_10, %c0_11], %11 {strides = array<i32>} : memref<2x64xf32, #tpu.memory_space<vmem>>, vector<2x64xf32>,
    %c0_i32_12 = arith.constant 0 : i32
    %13 = arith.cmpi eq, %arg2, %c0_i32_12 : i32
    %14 = arith.extui %13 : i1 to i32
    %c0_i32_13 = arith.constant 0 : i32
    %15 = arith.cmpi ne, %14, %c0_i32_13 : i32
    scf.if %15 {
      %c0_14 = arith.constant 0 : index
      %c0_15 = arith.constant 0 : index
      %16 = vector.load %arg6[%c0_14, %c0_15] : memref<2x64xf32, #tpu.memory_space<vmem>>, vector<2x64xf32>
      %cst_16 = arith.constant 6.250000e-02 : f32
      %17 = vector.broadcast %cst_16 : f32 to vector<2x64xf32>
      %18 = arith.mulf %16, %17 : vector<2x64xf32>
      %c0_17 = arith.constant 0 : index
      %c0_18 = arith.constant 0 : index
      %19 = vector.load %arg7[%c0_17, %c0_18] : memref<2x64xf32, #tpu.memory_space<vmem>>, vector<2x64xf32>
      %20 = arith.mulf %16, %18 : vector<2x64xf32>
      %21 = arith.subf %19, %20 : vector<2x64xf32>
      %cst_19 = arith.constant 0.0666666701 : f32
      %22 = vector.broadcast %cst_19 : f32 to vector<2x64xf32>
      %23 = arith.mulf %21, %22 : vector<2x64xf32>
      %cst_20 = arith.constant 0.000000e+00 : f32
      %24 = vector.broadcast %cst_20 : f32 to vector<2x64xf32>
      %25 = arith.maximumf %23, %24 : vector<2x64xf32>
      %cst_21 = arith.constant 9.99999993E-9 : f32
      %26 = vector.broadcast %cst_21 : f32 to vector<2x64xf32>
      %27 = arith.addf %25, %26 : vector<2x64xf32>
      %28 = math.sqrt %27 : vector<2x64xf32>
      %c0_22 = arith.constant 0 : index
      %c0_23 = arith.constant 0 : index
      %29 = vector.load %arg4[%c0_22, %c0_23] : memref<2x64xf32, #tpu.memory_space<vmem>>, vector<2x64xf32>
      tpu.vector_store %arg4[%c0_22, %c0_23], %18 {strides = array<i32>} : memref<2x64xf32, #tpu.memory_space<vmem>>, vector<2x64xf32>,
      %c0_24 = arith.constant 0 : index
      %c0_25 = arith.constant 0 : index
      %30 = vector.load %arg5[%c0_24, %c0_25] : memref<2x64xf32, #tpu.memory_space<vmem>>, vector<2x64xf32>
      tpu.vector_store %arg5[%c0_24, %c0_25], %28 {strides = array<i32>} : memref<2x64xf32, #tpu.memory_space<vmem>>, vector<2x64xf32>,
    } else {
    }
    return
  }
  func.func @transform_0(%arg0: i32, %arg1: i32, %arg2: i32) -> (i32, i32, i32) {
    %c0_i32 = arith.constant 0 : i32
    return %arg0, %arg1, %arg2 : i32, i32, i32
  }
  func.func @transform_1(%arg0: i32, %arg1: i32, %arg2: i32) -> (i32, i32) {
    %c0_i32 = arith.constant 0 : i32
    return %arg0, %arg1 : i32, i32
  }
  func.func @transform_2(%arg0: i32, %arg1: i32, %arg2: i32) -> (i32, i32) {
    %c0_i32 = arith.constant 0 : i32
    return %arg0, %arg1 : i32, i32
  }
}

</mosaic_0001>

<llo_original>
// kernel: tpu_custom_call.1
$region0: #{tpu_custom_call.1}
  #allocation0 [shape = 'u32[]', space=smem, size = 0x4, offset = 0x4, fixed_abs, tag = 'smem constant byte address 0x4 - core index']
  #allocation1 [shape = 'u32[72,128]{1,0:T(1,128)}', space=vmem, size = 0x9000, scoped, tag = 'internal scratch']
  #allocation2 [shape = 'f32[2,64]{1,0:T(2,128)}', space=vmem, size = 0x400, scoped, tag = 'scratch operand']
  #allocation3 [shape = 'f32[2,64]{1,0:T(2,128)}', space=vmem, size = 0x400, scoped, tag = 'scratch operand']
  %s0 = inlined_call_operand.vmem [shape: f32[2,64,16], index: 0, kind: input, shape index: {}]
  %s1 = inlined_call_operand.hbm [shape: f32[2,64], index: 1, kind: output, shape index: {0}]
  %s2 = inlined_call_operand.hbm [shape: f32[2,64], index: 2, kind: output, shape index: {1}]
  %3 = xla_tuple %s1, %s2
  %s4 = sld [smem:[#allocation0]]
  $region30: #{tpu_custom_call.1} parent=0
    _
  %s6 = ssub.s32 1, %s4
  %s7 = scalar_select 0, %s6, %s4
  $region1: #{tpu_custom_call.1} parent=0
    #allocation4 [shape = 'u8[1024]{0}', space=vmem, size = 0x400, scoped, tag = 'output window, operand 0, single buffered']
    #allocation5 [shape = 's32[1]{0}', space=sflag, size = 0x4, scoped, tag = 'scoped memory for tpu_custom_call.1']
    #allocation6 [shape = 'u8[1024]{0}', space=vmem, size = 0x400, scoped, tag = 'output window, operand 1, single buffered']
    #allocation7 [shape = 's32[1]{0}', space=sflag, size = 0x4, scoped, tag = 'scoped memory for tpu_custom_call.1']
    %8 = vsyncpa [#allocation5], 0
    %9 = vsyncpa [#allocation7], 0
    // Predicated region
    $region2: #{tpu_custom_call.1} parent=1 // pred_check
      _
    $region3: #{tpu_custom_call.1} parent=1 // pred_check_branch
      %11 = sbr.rel (0) target = $region5
    $region4: #{tpu_custom_call.1} parent=1 // pred_region
      _
    $region5: #{tpu_custom_call.1} parent=1 // pred_fallthru
      _
    %p12 = scmp.eq.s32.totalorder 0, 0
    // Predicated region
    $region6: #{tpu_custom_call.1} parent=1 // pred_check
      %p13 = pneg %p12
    $region7: #{tpu_custom_call.1} parent=1 // pred_check_branch
      %15 = sbr.rel (%p13) target = $region9
    $region8: #{tpu_custom_call.1} parent=1 // pred_region
      %vm16 = vcmask 517120
      %17 = vst.msk [vmem:[#allocation2] sm:$0x3] %vm16, 0.0
      %18 = vst.msk [vmem:[#allocation3] sm:$0x3] %vm16, 0.0
    $region9: #{tpu_custom_call.1} parent=1 // pred_fallthru
      _
    %v19 = vld [vmem:[%s0] sm:$0xff]
    %v20 = vld [vmem:[%s0 + $0x8] sm:$0xff]
    %v21 = vld [vmem:[%s0 + $0x10] sm:$0xff]
    %v22 = vld [vmem:[%s0 + $0x18] sm:$0xff]
    %v23 = vld [vmem:[%s0 + $0x20] sm:$0xff]
    %v24 = vld [vmem:[%s0 + $0x28] sm:$0xff]
    %v25 = vld [vmem:[%s0 + $0x30] sm:$0xff]
    %v26 = vld [vmem:[%s0 + $0x38] sm:$0xff]
    %v27 = vld [vmem:[%s0 + $0x40] sm:$0xff]
    %v28 = vld [vmem:[%s0 + $0x48] sm:$0xff]
    %v29 = vld [vmem:[%s0 + $0x50] sm:$0xff]
    %v30 = vld [vmem:[%s0 + $0x58] sm:$0xff]
    %v31 = vld [vmem:[%s0 + $0x60] sm:$0xff]
    %v32 = vld [vmem:[%s0 + $0x68] sm:$0xff]
    %v33 = vld [vmem:[%s0 + $0x70] sm:$0xff]
    %v34 = vld [vmem:[%s0 + $0x78] sm:$0xff]
    %v35 = vld [vmem:[#allocation2] sm:$0x3]
    %vm36 = vcmask 130048
    %v37 = vsel %vm36, %v19, 0.0
    %38 = vadd.xlane.f32.xlu0 %v37
    %v39 = vpop.xlane.xlu0 %38
    %v40 = vsel %vm36, %v20, 0.0
    %41 = vadd.xlane.f32.xlu0 %v40
    %v42 = vpop.xlane.xlu0 %41
    %v43 = vsel %vm36, %v21, 0.0
    %44 = vadd.xlane.f32.xlu0 %v43
    %v45 = vpop.xlane.xlu0 %44
    %v46 = vsel %vm36, %v22, 0.0
    %47 = vadd.xlane.f32.xlu0 %v46
    %v48 = vpop.xlane.xlu0 %47
    %v49 = vsel %vm36, %v23, 0.0
    %50 = vadd.xlane.f32.xlu0 %v49
    %v51 = vpop.xlane.xlu0 %50
    %v52 = vsel %vm36, %v24, 0.0
    %53 = vadd.xlane.f32.xlu0 %v52
    %v54 = vpop.xlane.xlu0 %53
    %v55 = vsel %vm36, %v25, 0.0
    %56 = vadd.xlane.f32.xlu0 %v55
    %v57 = vpop.xlane.xlu0 %56
    %v58 = vsel %vm36, %v26, 0.0
    %59 = vadd.xlane.f32.xlu0 %v58
    %v60 = vpop.xlane.xlu0 %59
    %v61 = vsel %vm36, %v27, 0.0
    %62 = vadd.xlane.f32.xlu0 %v61
    %v63 = vpop.xlane.xlu0 %62
    %v64 = vsel %vm36, %v28, 0.0
    %65 = vadd.xlane.f32.xlu0 %v64
    %v66 = vpop.xlane.xlu0 %65
    %v67 = vsel %vm36, %v29, 0.0
    %68 = vadd.xlane.f32.xlu0 %v67
    %v69 = vpop.xlane.xlu0 %68
    %v70 = vsel %vm36, %v30, 0.0
    %71 = vadd.xlane.f32.xlu0 %v70
    %v72 = vpop.xlane.xlu0 %71
    %v73 = vsel %vm36, %v31, 0.0
    %74 = vadd.xlane.f32.xlu0 %v73
    %v75 = vpop.xlane.xlu0 %74
    %v76 = vsel %vm36, %v32, 0.0
    %77 = vadd.xlane.f32.xlu0 %v76
    %v78 = vpop.xlane.xlu0 %77
    %v79 = vsel %vm36, %v33, 0.0
    %80 = vadd.xlane.f32.xlu0 %v79
    %v81 = vpop.xlane.xlu0 %80
    %v82 = vsel %vm36, %v34, 0.0
    %83 = vadd.xlane.f32.xlu0 %v82
    %v84 = vpop.xlane.xlu0 %83
    %v101 = vlaneseq
    %v102 = vand.u32 %v101, 127
    %v103 = vperm.slane %v39, %v102
    %v104 = vadd.s32 %v102, 4294967288
    %v105 = vperm.slane %v42, %v104
    %vm106 = vcmask 130112
    %v107 = vsel %vm106, %v105, %v103
    %v108 = vadd.s32 %v102, 4294967280
    %v109 = vperm.slane %v45, %v108
    %vm110 = vcmask 195712
    %v111 = vsel %vm110, %v109, %v107
    %v112 = vadd.s32 %v102, 4294967272
    %v113 = vperm.slane %v48, %v112
    %vm114 = vcmask 261312
    %v115 = vsel %vm114, %v113, %v111
    %v116 = vadd.s32 %v102, 4294967264
    %v117 = vperm.slane %v51, %v116
    %vm118 = vcmask 326912
    %v119 = vsel %vm118, %v117, %v115
    %v120 = vadd.s32 %v102, 4294967256
    %v121 = vperm.slane %v54, %v120
    %vm122 = vcmask 392512
    %v123 = vsel %vm122, %v121, %v119
    %v124 = vadd.s32 %v102, 4294967248
    %v125 = vperm.slane %v57, %v124
    %vm126 = vcmask 458112
    %v127 = vsel %vm126, %v125, %v123
    %v128 = vadd.s32 %v102, 4294967240
    %v129 = vperm.slane %v60, %v128
    %vm130 = vcmask 523712
    %v131 = vsel %vm130, %v129, %v127
    %v132 = vperm.slane %v63, %v102
    %v133 = vperm.slane %v66, %v104
    %v134 = vsel %vm106, %v133, %v132
    %v135 = vperm.slane %v69, %v108
    %v136 = vsel %vm110, %v135, %v134
    %v137 = vperm.slane %v72, %v112
    %v138 = vsel %vm114, %v137, %v136
    %v139 = vperm.slane %v75, %v116
    %v140 = vsel %vm118, %v139, %v138
    %v141 = vperm.slane %v78, %v120
    %v142 = vsel %vm122, %v141, %v140
    %v143 = vperm.slane %v81, %v124
    %v144 = vsel %vm126, %v143, %v142
    %v145 = vperm.slane %v84, %v128
    %v146 = vsel %vm130, %v145, %v144
    %vm147 = vcmask 1041409
    %v148 = vsel %vm147, %v146, %v131
    %v150 = vadd.f32 %v35, %v148
    %vm151 = vcmask 517120
    %152 = vst.msk [vmem:[#allocation2] sm:$0x3] %vm151, %v150
    %v153 = vld [vmem:[#allocation3] sm:$0x3]
    %v154 = vmul.f32 %v19, %v19
    %v155 = vmul.f32 %v20, %v20
    %v156 = vmul.f32 %v21, %v21
    %v157 = vmul.f32 %v22, %v22
    %v158 = vmul.f32 %v23, %v23
    %v159 = vmul.f32 %v24, %v24
    %v160 = vmul.f32 %v25, %v25
    %v161 = vmul.f32 %v26, %v26
    %v162 = vmul.f32 %v27, %v27
    %v163 = vmul.f32 %v28, %v28
    %v164 = vmul.f32 %v29, %v29
    %v165 = vmul.f32 %v30, %v30
    %v166 = vmul.f32 %v31, %v31
    %v167 = vmul.f32 %v32, %v32
    %v168 = vmul.f32 %v33, %v33
    %v169 = vmul.f32 %v34, %v34
    %v170 = vsel %vm36, %v154, 0.0
    %171 = vadd.xlane.f32.xlu0 %v170
    %v172 = vpop.xlane.xlu0 %171
    %v173 = vsel %vm36, %v155, 0.0
    %174 = vadd.xlane.f32.xlu0 %v173
    %v175 = vpop.xlane.xlu0 %174
    %v176 = vsel %vm36, %v156, 0.0
    %177 = vadd.xlane.f32.xlu0 %v176
    %v178 = vpop.xlane.xlu0 %177
    %v179 = vsel %vm36, %v157, 0.0
    %180 = vadd.xlane.f32.xlu0 %v179
    %v181 = vpop.xlane.xlu0 %180
    %v182 = vsel %vm36, %v158, 0.0
    %183 = vadd.xlane.f32.xlu0 %v182
    %v184 = vpop.xlane.xlu0 %183
    %v185 = vsel %vm36, %v159, 0.0
    %186 = vadd.xlane.f32.xlu0 %v185
    %v187 = vpop.xlane.xlu0 %186
    %v188 = vsel %vm36, %v160, 0.0
    %189 = vadd.xlane.f32.xlu0 %v188
    %v190 = vpop.xlane.xlu0 %189
    %v191 = vsel %vm36, %v161, 0.0
    %192 = vadd.xlane.f32.xlu0 %v191
    %v193 = vpop.xlane.xlu0 %192
    %v194 = vsel %vm36, %v162, 0.0
    %195 = vadd.xlane.f32.xlu0 %v194
    %v196 = vpop.xlane.xlu0 %195
    %v197 = vsel %vm36, %v163, 0.0
    %198 = vadd.xlane.f32.xlu0 %v197
    %v199 = vpop.xlane.xlu0 %198
    %v200 = vsel %vm36, %v164, 0.0
    %201 = vadd.xlane.f32.xlu0 %v200
    %v202 = vpop.xlane.xlu0 %201
    %v203 = vsel %vm36, %v165, 0.0
    %204 = vadd.xlane.f32.xlu0 %v203
    %v205 = vpop.xlane.xlu0 %204
    %v206 = vsel %vm36, %v166, 0.0
    %207 = vadd.xlane.f32.xlu0 %v206
    %v208 = vpop.xlane.xlu0 %207
    %v209 = vsel %vm36, %v167, 0.0
    %210 = vadd.xlane.f32.xlu0 %v209
    %v211 = vpop.xlane.xlu0 %210
    %v212 = vsel %vm36, %v168, 0.0
    %213 = vadd.xlane.f32.xlu0 %v212
    %v214 = vpop.xlane.xlu0 %213
    %v215 = vsel %vm36, %v169, 0.0
    %216 = vadd.xlane.f32.xlu0 %v215
    %v217 = vpop.xlane.xlu0 %216
    %v234 = vperm.slane %v172, %v102
    %v235 = vperm.slane %v175, %v104
    %v236 = vsel %vm106, %v235, %v234
    %v237 = vperm.slane %v178, %v108
    %v238 = vsel %vm110, %v237, %v236
    %v239 = vperm.slane %v181, %v112
    %v240 = vsel %vm114, %v239, %v238
    %v241 = vperm.slane %v184, %v116
    %v242 = vsel %vm118, %v241, %v240
    %v243 = vperm.slane %v187, %v120
    %v244 = vsel %vm122, %v243, %v242
    %v245 = vperm.slane %v190, %v124
    %v246 = vsel %vm126, %v245, %v244
    %v247 = vperm.slane %v193, %v128
    %v248 = vsel %vm130, %v247, %v246
    %v249 = vperm.slane %v196, %v102
    %v250 = vperm.slane %v199, %v104
    %v251 = vsel %vm106, %v250, %v249
    %v252 = vperm.slane %v202, %v108
    %v253 = vsel %vm110, %v252, %v251
    %v254 = vperm.slane %v205, %v112
    %v255 = vsel %vm114, %v254, %v253
    %v256 = vperm.slane %v208, %v116
    %v257 = vsel %vm118, %v256, %v255
    %v258 = vperm.slane %v211, %v120
    %v259 = vsel %vm122, %v258, %v257
    %v260 = vperm.slane %v214, %v124
    %v261 = vsel %vm126, %v260, %v259
    %v262 = vperm.slane %v217, %v128
    %v263 = vsel %vm130, %v262, %v261
    %v264 = vsel %vm147, %v263, %v248
    %v266 = vadd.f32 %v153, %v264
    %267 = vst.msk [vmem:[#allocation3] sm:$0x3] %vm151, %v266
    // Predicated region
    $region10: #{tpu_custom_call.1} parent=1 // pred_check
      %p268 = pneg %p12
    $region11: #{tpu_custom_call.1} parent=1 // pred_check_branch
      %270 = sbr.rel (%p268) target = $region13
    $region12: #{tpu_custom_call.1} parent=1 // pred_region
      %v271 = vld [vmem:[#allocation2] sm:$0x3]
      %v272 = vmul.f32 %v271, 0.0625
      %v273 = vld [vmem:[#allocation3] sm:$0x3]
      %v274 = vmul.f32 %v271, %v272
      %v275 = vsub.f32 %v273, %v274
      %v276 = vmul.f32 %v275, 0.06666667
      %v277 = vmax.f32 %v276, 0.0
      %v278 = vadd.f32 %v277, 1e-08
      %v279 = vrsqrt.pop %v278
      %v280 = vmul.f32 %v279, %v278
      %v281 = vmul.f32 %v280, %v279
      %v282 = vmul.f32 0.5, %v281
      %v283 = vsub.f32 1.5, %v282
      %v284 = vmul.f32 %v279, %v283
      %v285 = vmul.f32 %v278, %v284
      %vm286 = vcmp.eq.f32.partialorder %v278, inf
      %v287 = vsel %vm286, %v278, %v285
      %vm288 = vcmp.eq.f32.partialorder %v278, 0.0
      %v289 = vand.u32 %v278, 2147483648
      %v290 = vsel %vm288, %v289, %v287
      %291 = vst.msk [vmem:[#allocation4] sm:$0x3] %vm151, %v272
      %292 = vst.msk [vmem:[#allocation6] sm:$0x3] %vm151, %v290
    $region13: #{tpu_custom_call.1} parent=1 // pred_fallthru
      _
    // Predicated region
    $region14: #{tpu_custom_call.1} parent=1 // pred_check
      _
    $region15: #{tpu_custom_call.1} parent=1 // pred_check_branch
      %294 = sbr.rel (0) target = $region17
    $region16: #{tpu_custom_call.1} parent=1 // pred_region
      %296 = vsyncadd [#allocation5], 0
      %s298 = sshll.u32 [#allocation4], 4
      %s299 = int_to_ptr.vmem [resolvable:$true] %s298
      %s300 = sshll.u32 %s1, 4
      %s301 = int_to_ptr.hbm [resolvable:$true] %s300
      %303 = dma.vmem_to_hbm [thread:$0]  %s299, 32, %s301, [#allocation5]
    $region17: #{tpu_custom_call.1} parent=1 // pred_fallthru
      _
    // Predicated region
    $region18: #{tpu_custom_call.1} parent=1 // pred_check
      _
    $region19: #{tpu_custom_call.1} parent=1 // pred_check_branch
      %305 = sbr.rel (0) target = $region21
    $region20: #{tpu_custom_call.1} parent=1 // pred_region
      %307 = vsyncadd [#allocation7], 0
      %s309 = sshll.u32 [#allocation6], 4
      %s310 = int_to_ptr.vmem [resolvable:$true] %s309
      %s311 = sshll.u32 %s2, 4
      %s312 = int_to_ptr.hbm [resolvable:$true] %s311
      %314 = dma.vmem_to_hbm [thread:$0]  %s310, 32, %s312, [#allocation7]
    $region21: #{tpu_custom_call.1} parent=1 // pred_fallthru
      _
    // Predicated region
    $region22: #{tpu_custom_call.1} parent=1 // pred_check
      _
    $region23: #{tpu_custom_call.1} parent=1 // pred_check_branch
      %316 = sbr.rel (0) target = $region25
    $region24: #{tpu_custom_call.1} parent=1 // pred_region
      %318 = dma.done [#allocation5], 32
    $region25: #{tpu_custom_call.1} parent=1 // pred_fallthru
      _
    // Predicated region
    $region26: #{tpu_custom_call.1} parent=1 // pred_check
      _
    $region27: #{tpu_custom_call.1} parent=1 // pred_check_branch
      %320 = sbr.rel (0) target = $region29
    $region28: #{tpu_custom_call.1} parent=1 // pred_region
      %322 = dma.done [#allocation7], 32
    $region29: #{tpu_custom_call.1} parent=1 // pred_fallthru
      _
    %323 = vsyncpa [#allocation5], 1
    %324 = vsyncpa [#allocation7], 1

</llo_original>
